<compile_context>
chip_gen: v7x
topology: tpu7x:2x2x1
jax: 0.10.0
libtpu: 0.0.40
codegen_flags: <defaults>
</compile_context>

<pallas_src>
import jax
import jax.numpy as jnp
from jax import lax
from jax.experimental import pallas as pl
from jax.experimental.pallas import tpu as pltpu

# ---------------- problem sizes ----------------
N      = 16          # nodes per graph
NFEAT  = 32          # input feature dim
NHID   = 16          # hidden dim (GCNConv output per node)
G      = 8           # graphs lane-packed per grid step: G*NHID = 128 (full lane width)
GF     = G * NFEAT   # 256
GN     = G * N       # 128
GD     = G * NHID    # 128


def gcn_prelu_kernel(alpha_ref, x_ref, adj_ref, wbd_ref, bias_ref, blk_ref, out_ref):
    # alpha: [1]  (SMEM)        PReLU slope
    # x:    [1, N, G*NFEAT]     lane-packed node features of G graphs (graph-major lanes)
    # adj:  [1, N, G*N]         lane-packed normalized adjacency D^-1/2 (A+I) D^-1/2
    # wbd:  [G*NFEAT, G*NHID]   block-diagonal weight      (VMEM-resident across steps)
    # bias: [1, G*NHID]         bias tiled per graph       (resident)
    # blk:  [G*N, G*NHID]       graph block-diagonal mask  (resident)
    # out:  [1, N, G*NHID]
    # -- MXU pass 1: feature transform for all G graphs at once --------------------
    h = jnp.dot(x_ref[0], wbd_ref[...], preferred_element_type=jnp.float32)   # [N, GD]
    # -- MXU pass 2: per-graph neighbourhood aggregation as ONE block-diag matmul --
    h_bd = jnp.concatenate([h] * G, axis=0) * blk_ref[...]                    # [GN, GD]
    agg = jnp.dot(adj_ref[0], h_bd, preferred_element_type=jnp.float32)       # [N, GD]
    # -- bias + PReLU, single full-width lane-dense store ---------------------------
    z = agg + bias_ref[...]
    a = alpha_ref[0]
    out_ref[0] = jnp.where(z > 0, z, a * z).astype(out_ref.dtype)


def build_normalized_adjacency(edge_index, n):
    """edge_index: [B, 2, E] int32 (row 0 = source j, row 1 = target i).

    One vectorized pass over the whole batch (single scatter, no per-graph loops).
    Duplicate edges are deduplicated by the dense-adjacency formulation.
    """
    src = edge_index[:, 0, :]
    dst = edge_index[:, 1, :]
    b = jnp.broadcast_to(jnp.arange(edge_index.shape[0])[:, None], src.shape)
    adj = jnp.zeros((edge_index.shape[0], n, n), jnp.float32).at[b, dst, src].set(1.0)
    idx = jnp.arange(n)
    adj = adj.at[:, idx, idx].set(1.0)                       # self loops
    dinv = lax.rsqrt(jnp.sum(adj, axis=-1))                  # deg >= 1 (self loop)
    return adj * dinv[:, :, None] * dinv[:, None, :]         # D^-1/2 (A+I) D^-1/2


def encoder_dgi_forward(x, edge_index, W, bias, alpha):
    """x: [B, N, NFEAT] f32, edge_index: [B, 2, E] int32,
    W: [NFEAT, NHID], bias: [NHID], alpha: PReLU parameter (scalar)."""
    B = x.shape[0]
    adjn = build_normalized_adjacency(edge_index, N)          # [B, N, N]

    # pad the batch to a multiple of G (zero graphs -> zero output, sliced off below)
    ng = -(-B // G)
    pad = ng * G - B
    if pad:
        x = jnp.concatenate([x, jnp.zeros((pad, N, NFEAT), x.dtype)], axis=0)
        adjn = jnp.concatenate([adjn, jnp.zeros((pad, N, N), adjn.dtype)], axis=0)

    # lane-pack G graphs per grid step (graph-major along lanes) -- layout plumbing
    xp = x.reshape(ng, G, N, NFEAT).transpose(0, 2, 1, 3).reshape(ng, N, GF)
    ap = adjn.reshape(ng, G, N, N).transpose(0, 2, 1, 3).reshape(ng, N, GN)

    # step-invariant parameters / constants (kept resident in VMEM across the grid)
    w_bd   = jnp.kron(jnp.eye(G, dtype=jnp.float32), W.astype(jnp.float32))   # [GF, GD]
    bias2d = jnp.tile(bias.astype(jnp.float32), G).reshape(1, GD)             # [1, GD]
    blk    = jnp.kron(jnp.eye(G, dtype=jnp.float32),
                      jnp.ones((N, NHID), jnp.float32))                       # [GN, GD]
    alpha1 = jnp.asarray(alpha, jnp.float32).reshape(1)

    out = pl.pallas_call(
        gcn_prelu_kernel,
        out_shape=jax.ShapeDtypeStruct((ng, N, GD), jnp.float32),
        grid=(ng,),
        in_specs=[
            pl.BlockSpec(memory_space=pltpu.MemorySpace.SMEM),      # alpha (scalar)
            pl.BlockSpec((1, N, GF), lambda g: (g, 0, 0)),          # x     (per step)
            pl.BlockSpec((1, N, GN), lambda g: (g, 0, 0)),          # adj   (per step)
            pl.BlockSpec((GF, GD), lambda g: (0, 0)),               # W_bd  (resident)
            pl.BlockSpec((1, GD), lambda g: (0, 0)),                # bias  (resident)
            pl.BlockSpec((GN, GD), lambda g: (0, 0)),               # mask  (resident)
        ],
        out_specs=pl.BlockSpec((1, N, GD), lambda g: (g, 0, 0)),
        compiler_params=pltpu.CompilerParams(
            dimension_semantics=("parallel",)),                     # v7x: 2 TCs split it
    )(alpha1, xp, ap, w_bd, bias2d, blk)

    # unpack lanes back to [B, N, NHID]
    out = out.reshape(ng, N, G, NHID).transpose(0, 2, 1, 3).reshape(ng * G, N, NHID)
    return out[:B]


def encoder_dgi_reference(x, edge_index, W, bias, alpha):
    """Pure-JAX dense reference (GCNConv + PReLU) for validation."""
    adjn = build_normalized_adjacency(edge_index, N)
    h = jnp.einsum("bnf,fd->bnd", x, W)
    z = jnp.einsum("bij,bjd->bid", adjn, h) + bias[None, None, :]
    return jnp.where(z > 0, z, alpha * z)


if __name__ == "__main__":
    key = jax.random.PRNGKey(0)
    k_x, k_e, k_w, k_b = jax.random.split(key, 4)

    B, E = 16, 40                                        # 16 small graphs, 40 edges each
    x = jax.random.normal(k_x, (B, N, NFEAT), jnp.float32)
    edge_index = jax.random.randint(k_e, (B, 2, E), 0, N, jnp.int32)

    # deterministic parameter init (glorot-ish weight, small bias, PReLU default slope)
    W = jax.random.normal(k_w, (NFEAT, NHID), jnp.float32) * ((2.0 / (NFEAT + NHID)) ** 0.5)
    bias = jax.random.normal(k_b, (NHID,), jnp.float32) * 0.01
    alpha = 0.25                                         # nn.PReLU() default init

    out = jax.block_until_ready(encoder_dgi_forward(x, edge_index, W, bias, alpha))
    ref = encoder_dgi_reference(x, edge_index, W, bias, alpha)

    assert out.shape == (B, N, NHID)
    assert jnp.allclose(out, ref, atol=2e-4, rtol=2e-4), "mismatch vs reference"

    print("KERNEL_OK")
</pallas_src>

<mosaic_0001>
module attributes {stable_mosaic.version = 11 : i64} {
  func.func @gcn_prelu_kernel(%arg0: i32, %arg1: memref<1xf32, #tpu.memory_space<smem>>, %arg2: memref<1x16x256xf32, #tpu.memory_space<vmem>>, %arg3: memref<1x16x128xf32, #tpu.memory_space<vmem>>, %arg4: memref<256x128xf32, #tpu.memory_space<vmem>>, %arg5: memref<1x128xf32, #tpu.memory_space<vmem>>, %arg6: memref<128x128xf32, #tpu.memory_space<vmem>>, %arg7: memref<1x16x128xf32, #tpu.memory_space<vmem>>) attributes {dimension_semantics = [#tpu.dimension_semantics<parallel>], iteration_bounds = array<i64: 2>, scalar_prefetch = 0 : i64, scratch_operands = 0 : i64, tpu.core_type = #tpu.core_type<tc>, window_params = [{transform_indices = @transform_0, window_bounds = array<i64: 1>}, {transform_indices = @transform_1, window_bounds = array<i64: 1, 16, 256>}, {transform_indices = @transform_2, window_bounds = array<i64: 1, 16, 128>}, {pipeline_mode = #tpu.pipeline_mode<synchronous>, transform_indices = @transform_3, window_bounds = array<i64: 256, 128>}, {pipeline_mode = #tpu.pipeline_mode<synchronous>, transform_indices = @transform_4, window_bounds = array<i64: 1, 128>}, {pipeline_mode = #tpu.pipeline_mode<synchronous>, transform_indices = @transform_5, window_bounds = array<i64: 128, 128>}, {transform_indices = @transform_6, window_bounds = array<i64: 1, 16, 128>}]} {
    %c0 = arith.constant 0 : index
    %c0_0 = arith.constant 0 : index
    %c0_1 = arith.constant 0 : index
    %0 = vector.load %arg2[%c0, %c0_0, %c0_1] : memref<1x16x256xf32, #tpu.memory_space<vmem>>, vector<1x16x256xf32>
    %1 = vector.shape_cast %0 : vector<1x16x256xf32> to vector<16x256xf32>
    %c0_2 = arith.constant 0 : index
    %c0_3 = arith.constant 0 : index
    %2 = vector.load %arg4[%c0_2, %c0_3] : memref<256x128xf32, #tpu.memory_space<vmem>>, vector<256x128xf32>
    %cst = arith.constant dense<0.000000e+00> : vector<16x128xf32>
    %3 = tpu.matmul %1, %2, %cst {dimension_numbers = #tpu.dot_dimension_numbers<[1], [0], [0], [1], [0, 0, 1, 1], [], []>} : vector<16x256xf32>, vector<256x128xf32>, vector<16x128xf32> -> vector<16x128xf32>
    %4 = tpu.concatenate %3, %3, %3, %3, %3, %3, %3, %3 in 0 : vector<16x128xf32>, vector<16x128xf32>, vector<16x128xf32>, vector<16x128xf32>, vector<16x128xf32>, vector<16x128xf32>, vector<16x128xf32>, vector<16x128xf32> -> vector<128x128xf32>
    %c0_4 = arith.constant 0 : index
    %c0_5 = arith.constant 0 : index
    %5 = vector.load %arg6[%c0_4, %c0_5] : memref<128x128xf32, #tpu.memory_space<vmem>>, vector<128x128xf32>
    %6 = arith.mulf %4, %5 : vector<128x128xf32>
    %c0_6 = arith.constant 0 : index
    %c0_7 = arith.constant 0 : index
    %c0_8 = arith.constant 0 : index
    %7 = vector.load %arg3[%c0_6, %c0_7, %c0_8] : memref<1x16x128xf32, #tpu.memory_space<vmem>>, vector<1x16x128xf32>
    %8 = vector.shape_cast %7 : vector<1x16x128xf32> to vector<16x128xf32>
    %cst_9 = arith.constant dense<0.000000e+00> : vector<16x128xf32>
    %9 = tpu.matmul %8, %6, %cst_9 {dimension_numbers = #tpu.dot_dimension_numbers<[1], [0], [0], [1], [0, 0, 1, 1], [], []>} : vector<16x128xf32>, vector<128x128xf32>, vector<16x128xf32> -> vector<16x128xf32>
    %c0_10 = arith.constant 0 : index
    %c0_11 = arith.constant 0 : index
    %10 = vector.load %arg5[%c0_10, %c0_11] : memref<1x128xf32, #tpu.memory_space<vmem>>, vector<1x128xf32>
    %11 = vector.broadcast %10 : vector<1x128xf32> to vector<16x128xf32>
    %12 = arith.addf %9, %11 : vector<16x128xf32>
    %c0_12 = arith.constant 0 : index
    %13 = memref.load %arg1[%c0_12] : memref<1xf32, #tpu.memory_space<smem>>
    %cst_13 = arith.constant 0.000000e+00 : f32
    %14 = vector.broadcast %cst_13 : f32 to vector<16x128xf32>
    %15 = arith.cmpf ogt, %12, %14 : vector<16x128xf32>
    %16 = vector.broadcast %13 : f32 to vector<16x128xf32>
    %17 = arith.mulf %16, %12 : vector<16x128xf32>
    %18 = arith.select %15, %12, %17 : vector<16x128xi1>, vector<16x128xf32>
    %c0_14 = arith.constant 0 : index
    %c0_15 = arith.constant 0 : index
    %c0_16 = arith.constant 0 : index
    %19 = vector.load %arg7[%c0_14, %c0_15, %c0_16] : memref<1x16x128xf32, #tpu.memory_space<vmem>>, vector<1x16x128xf32>
    %20 = vector.shape_cast %19 : vector<1x16x128xf32> to vector<16x128xf32>
    %21 = vector.shape_cast %18 : vector<16x128xf32> to vector<1x16x128xf32>
    tpu.vector_store %arg7[%c0_14, %c0_15, %c0_16], %21 {strides = array<i32>} : memref<1x16x128xf32, #tpu.memory_space<vmem>>, vector<1x16x128xf32>,
    return
  }
  func.func @transform_0(%arg0: i32) -> i32 {
    %c0_i32 = arith.constant 0 : i32
    %c0_i32_0 = arith.constant 0 : i32
    return %c0_i32 : i32
  }
  func.func @transform_1(%arg0: i32) -> (i32, i32, i32) {
    %c0_i32 = arith.constant 0 : i32
    %c0_i32_0 = arith.constant 0 : i32
    %c0_i32_1 = arith.constant 0 : i32
    return %arg0, %c0_i32, %c0_i32_0 : i32, i32, i32
  }
  func.func @transform_2(%arg0: i32) -> (i32, i32, i32) {
    %c0_i32 = arith.constant 0 : i32
    %c0_i32_0 = arith.constant 0 : i32
    %c0_i32_1 = arith.constant 0 : i32
    return %arg0, %c0_i32, %c0_i32_0 : i32, i32, i32
  }
  func.func @transform_3(%arg0: i32) -> (i32, i32) {
    %c0_i32 = arith.constant 0 : i32
    %c0_i32_0 = arith.constant 0 : i32
    %c0_i32_1 = arith.constant 0 : i32
    return %c0_i32, %c0_i32_0 : i32, i32
  }
  func.func @transform_4(%arg0: i32) -> (i32, i32) {
    %c0_i32 = arith.constant 0 : i32
    %c0_i32_0 = arith.constant 0 : i32
    %c0_i32_1 = arith.constant 0 : i32
    return %c0_i32, %c0_i32_0 : i32, i32
  }
  func.func @transform_5(%arg0: i32) -> (i32, i32) {
    %c0_i32 = arith.constant 0 : i32
    %c0_i32_0 = arith.constant 0 : i32
    %c0_i32_1 = arith.constant 0 : i32
    return %c0_i32, %c0_i32_0 : i32, i32
  }
  func.func @transform_6(%arg0: i32) -> (i32, i32, i32) {
    %c0_i32 = arith.constant 0 : i32
    %c0_i32_0 = arith.constant 0 : i32
    %c0_i32_1 = arith.constant 0 : i32
    return %arg0, %c0_i32, %c0_i32_0 : i32, i32, i32
  }
}

</mosaic_0001>

<llo_original>
// kernel: tpu_custom_call.1
$region0: #{tpu_custom_call.1}
  #allocation0 [shape = 'u32[]', space=smem, size = 0x4, offset = 0x4, fixed_abs, tag = 'smem constant byte address 0x4 - core index']
  #allocation1 [shape = 'u32[144,128]{1,0:T(1,128)}', space=vmem, size = 0x12000, scoped, tag = 'internal scratch']
  #allocation2 [shape = 'f32[1]{0:T(128)S(6)}', space=smem, size = 0x200, scoped, tag = 'scoped memory for tpu_custom_call.1']
  %s0 = inlined_call_operand.<no memory space> [shape: f32[1], index: 0, kind: input, shape index: {}]
  %s1 = inlined_call_operand.hbm [shape: f32[2,16,256], index: 1, kind: input, shape index: {}]
  %s2 = inlined_call_operand.hbm [shape: f32[2,16,128], index: 2, kind: input, shape index: {}]
  %s3 = inlined_call_operand.hbm [shape: f32[256,128], index: 3, kind: input, shape index: {}]
  %s4 = inlined_call_operand.vmem [shape: f32[1,128], index: 4, kind: input, shape index: {}]
  %s5 = inlined_call_operand.hbm [shape: f32[128,128], index: 5, kind: input, shape index: {}]
  %s6 = inlined_call_operand.hbm [shape: f32[2,16,128], index: 6, kind: output, shape index: {}]
  %s7 = sld [smem:[#allocation0]]
  $region73: #{tpu_custom_call.1} parent=0
    _
  %s9 = ssub.s32 1, %s7
  %s10 = scalar_select 0, %s9, %s7
  %11 = sst [smem:[#allocation2]] %s0
  $region1: #{tpu_custom_call.1} parent=0
    #allocation3 [shape = 'u8[32768]{0}', space=vmem, size = 0x8000, scoped, tag = 'input window, operand 1']
    #allocation4 [shape = 's32[2]{0}', space=sflag, size = 0x8, scoped, tag = 'scoped memory for tpu_custom_call.1']
    #allocation5 [shape = 's32[2]{0}', space=sflag, size = 0x8, scoped, tag = 'scoped memory for tpu_custom_call.1']
    #allocation6 [shape = 'u8[16384]{0}', space=vmem, size = 0x4000, scoped, tag = 'input window, operand 2']
    #allocation7 [shape = 's32[2]{0}', space=sflag, size = 0x8, scoped, tag = 'scoped memory for tpu_custom_call.1']
    #allocation8 [shape = 'u8[131072]{0}', space=vmem, size = 0x20000, scoped, tag = 'input window, operand 3, single buffered']
    #allocation9 [shape = 'u8[65536]{0}', space=vmem, size = 0x10000, scoped, tag = 'input window, operand 5, single buffered']
    #allocation10 [shape = 's32[1]{0}', space=sflag, size = 0x4, scoped, tag = 'scoped memory for tpu_custom_call.1']
    #allocation11 [shape = 'u8[16384]{0}', space=vmem, size = 0x4000, scoped, tag = 'output window, operand 0']
    %12 = vsyncpa [#allocation4], 0
    %s13 = scalar_lea.sflag [#allocation4], 1
    %14 = vsyncpa %s13, 0
    %15 = vsyncpa [#allocation7], 0
    %s16 = scalar_lea.sflag [#allocation7], 1
    %17 = vsyncpa %s16, 0
    %18 = vsyncpa [#allocation10], 0
    %19 = vsyncpa [#allocation5], 0
    %s20 = scalar_lea.sflag [#allocation5], 1
    %21 = vsyncpa %s20, 0
    loop: start=0, step=1, limit=4
    $region2: #{tpu_custom_call.1} parent=1 // loop_pre_header
      _
    $region3: #{tpu_custom_call.1} parent=1 // loop_header
      %s23 = sphi 0, %s27
      %p24 = scmp.ge.s32.totalorder %s23, 4
      %s31 = sphi 0, %s31
      %s33 = sphi 0, %s31
      %s34 = sphi 0, %s33
      %s48 = sphi 0, %s34
      %s54 = sphi 0, %s56
      %s57 = sphi 0, %s54
      %s58 = sphi 0, %s57
      %s74 = sphi 0, %s58
      %s80 = sphi 0, %s82
      %s83 = sphi 0, %s80
      %s84 = sphi 0, %s83
      %s100 = sphi 0, %s84
      %s104 = sphi 0, %s104
      %s106 = sphi 0, %s104
      %s107 = sphi 0, %s106
      %s121 = sphi 0, %s107
      %s125 = sphi 0, %s125
      %s127 = sphi 0, %s125
      %s128 = sphi 0, %s127
      %s142 = sphi 0, %s128
      %s146 = sphi 0, %s146
      %s148 = sphi 0, %s146
      %s149 = sphi 0, %s148
      %s163 = sphi 0, %s149
      %s169 = sphi 0, %s171
      %s172 = sphi 0, %s169
      %s173 = sphi 0, %s172
      %s189 = sphi 0, %s173
    $region4: #{tpu_custom_call.1} parent=1 // loop_header_branch
      %26 = sbr.rel (%p24) target = $region8
    $region5: #{tpu_custom_call.1} parent=1 // loop_body
      %s28 = ssub.s32 %s23, 1
      %s29 = ssub.s32 %s23, 2
      %s30 = sadd.s32 %s23, 1
      %s32 = sadd.s32 %s31, 1
      %p35 = scmp.eq.s32.totalorder %s23, 1
      %p36 = scmp.ne.s32.totalorder %s31, %s33
      %p37 = scmp.eq.s32.totalorder %s23, 0
      %p38 = por %p36, %p37
      %p39 = scmp.ne.s32.totalorder %s31, %s33
      %p40 = scmp.eq.s32.totalorder %s28, 1
      %p41 = por %p39, %p40
      %p42 = scmp.ne.s32.totalorder %s33, %s34
      %p43 = scmp.eq.s32.totalorder %s28, 0
      %p44 = por %p42, %p43
      %p45 = scmp.ne.s32.totalorder %s33, %s34
      %p46 = scmp.eq.s32.totalorder %s29, 1
      %p47 = por %p45, %p46
      %p49 = scmp.ne.s32.totalorder %s34, %s48
      %p50 = scmp.eq.s32.totalorder %s29, 0
      %p51 = por %p49, %p50
      %s52 = ssub.s32 %s23, %s30
      %p53 = scmp.eq.s32.totalorder %s52, 0
      %s55 = sadd.s32 %s54, 1
      %s56 = scalar_select %p53, %s54, %s55
      %p59 = pneg %p53
      %p60 = scmp.eq.s32.totalorder %s23, 1
      %p61 = por %p59, %p60
      %p62 = scmp.ne.s32.totalorder %s54, %s57
      %p63 = scmp.eq.s32.totalorder %s23, 0
      %p64 = por %p62, %p63
      %p65 = scmp.ne.s32.totalorder %s54, %s57
      %p66 = scmp.eq.s32.totalorder %s28, 1
      %p67 = por %p65, %p66
      %p68 = scmp.ne.s32.totalorder %s57, %s58
      %p69 = scmp.eq.s32.totalorder %s28, 0
      %p70 = por %p68, %p69
      %p71 = scmp.ne.s32.totalorder %s57, %s58
      %p72 = scmp.eq.s32.totalorder %s29, 1
      %p73 = por %p71, %p72
      %p75 = scmp.ne.s32.totalorder %s58, %s74
      %p76 = scmp.eq.s32.totalorder %s29, 0
      %p77 = por %p75, %p76
      %s78 = ssub.s32 %s23, %s30
      %p79 = scmp.eq.s32.totalorder %s78, 0
      %s81 = sadd.s32 %s80, 1
      %s82 = scalar_select %p79, %s80, %s81
      %p85 = pneg %p79
      %p86 = scmp.eq.s32.totalorder %s23, 1
      %p87 = por %p85, %p86
      %p88 = scmp.ne.s32.totalorder %s80, %s83
      %p89 = scmp.eq.s32.totalorder %s23, 0
      %p90 = por %p88, %p89
      %p91 = scmp.ne.s32.totalorder %s80, %s83
      %p92 = scmp.eq.s32.totalorder %s28, 1
      %p93 = por %p91, %p92
      %p94 = scmp.ne.s32.totalorder %s83, %s84
      %p95 = scmp.eq.s32.totalorder %s28, 0
      %p96 = por %p94, %p95
      %p97 = scmp.ne.s32.totalorder %s83, %s84
      %p98 = scmp.eq.s32.totalorder %s29, 1
      %p99 = por %p97, %p98
      %p101 = scmp.ne.s32.totalorder %s84, %s100
      %p102 = scmp.eq.s32.totalorder %s29, 0
      %p103 = por %p101, %p102
      %s105 = sadd.s32 %s104, 1
      %p108 = scmp.eq.s32.totalorder %s23, 1
      %p109 = scmp.ne.s32.totalorder %s104, %s106
      %p110 = scmp.eq.s32.totalorder %s23, 0
      %p111 = por %p109, %p110
      %p112 = scmp.ne.s32.totalorder %s104, %s106
      %p113 = scmp.eq.s32.totalorder %s28, 1
      %p114 = por %p112, %p113
      %p115 = scmp.ne.s32.totalorder %s106, %s107
      %p116 = scmp.eq.s32.totalorder %s28, 0
      %p117 = por %p115, %p116
      %p118 = scmp.ne.s32.totalorder %s106, %s107
      %p119 = scmp.eq.s32.totalorder %s29, 1
      %p120 = por %p118, %p119
      %p122 = scmp.ne.s32.totalorder %s107, %s121
      %p123 = scmp.eq.s32.totalorder %s29, 0
      %p124 = por %p122, %p123
      %s126 = sadd.s32 %s125, 1
      %p129 = scmp.eq.s32.totalorder %s23, 1
      %p130 = scmp.ne.s32.totalorder %s125, %s127
      %p131 = scmp.eq.s32.totalorder %s23, 0
      %p132 = por %p130, %p131
      %p133 = scmp.ne.s32.totalorder %s125, %s127
      %p134 = scmp.eq.s32.totalorder %s28, 1
      %p135 = por %p133, %p134
      %p136 = scmp.ne.s32.totalorder %s127, %s128
      %p137 = scmp.eq.s32.totalorder %s28, 0
      %p138 = por %p136, %p137
      %p139 = scmp.ne.s32.totalorder %s127, %s128
      %p140 = scmp.eq.s32.totalorder %s29, 1
      %p141 = por %p139, %p140
      %p143 = scmp.ne.s32.totalorder %s128, %s142
      %p144 = scmp.eq.s32.totalorder %s29, 0
      %p145 = por %p143, %p144
      %s147 = sadd.s32 %s146, 1
      %p150 = scmp.eq.s32.totalorder %s23, 1
      %p151 = scmp.ne.s32.totalorder %s146, %s148
      %p152 = scmp.eq.s32.totalorder %s23, 0
      %p153 = por %p151, %p152
      %p154 = scmp.ne.s32.totalorder %s146, %s148
      %p155 = scmp.eq.s32.totalorder %s28, 1
      %p156 = por %p154, %p155
      %p157 = scmp.ne.s32.totalorder %s148, %s149
      %p158 = scmp.eq.s32.totalorder %s28, 0
      %p159 = por %p157, %p158
      %p160 = scmp.ne.s32.totalorder %s148, %s149
      %p161 = scmp.eq.s32.totalorder %s29, 1
      %p162 = por %p160, %p161
      %p164 = scmp.ne.s32.totalorder %s149, %s163
      %p165 = scmp.eq.s32.totalorder %s29, 0
      %p166 = por %p164, %p165
      %s167 = ssub.s32 %s23, %s30
      %p168 = scmp.eq.s32.totalorder %s167, 0
      %s170 = sadd.s32 %s169, 1
      %s171 = scalar_select %p168, %s169, %s170
      %p174 = pneg %p168
      %p175 = scmp.eq.s32.totalorder %s23, 1
      %p176 = por %p174, %p175
      %p177 = scmp.ne.s32.totalorder %s169, %s172
      %p178 = scmp.eq.s32.totalorder %s23, 0
      %p179 = por %p177, %p178
      %p180 = scmp.ne.s32.totalorder %s169, %s172
      %p181 = scmp.eq.s32.totalorder %s28, 1
      %p182 = por %p180, %p181
      %p183 = scmp.ne.s32.totalorder %s172, %s173
      %p184 = scmp.eq.s32.totalorder %s28, 0
      %p185 = por %p183, %p184
      %p186 = scmp.ne.s32.totalorder %s172, %s173
      %p187 = scmp.eq.s32.totalorder %s29, 1
      %p188 = por %p186, %p187
      %p190 = scmp.ne.s32.totalorder %s173, %s189
      %p191 = scmp.eq.s32.totalorder %s29, 0
      %p192 = por %p190, %p191
      %p193 = scmp.le.s32.totalorder 1, %s23
      %p194 = scmp.lt.s32.totalorder %s23, 3
      %p195 = pnand %p193, %p194
      %p196 = pneg %p195
      // Predicated region
      $region9: #{tpu_custom_call.1} parent=5 // pred_check
        _
      $region10: #{tpu_custom_call.1} parent=5 // pred_check_branch
        %198 = sbr.rel (%p195) target = $region12
      $region11: #{tpu_custom_call.1} parent=5 // pred_region
        %s199 = ssub.s32 %s23, 1
        // Predicated region
        $region13: #{tpu_custom_call.1} parent=11 // pred_check
          %p200 = pneg %p44
        $region14: #{tpu_custom_call.1} parent=11 // pred_check_branch
          %202 = sbr.rel (%p200) target = $region16
        $region15: #{tpu_custom_call.1} parent=11 // pred_region
          _
        $region16: #{tpu_custom_call.1} parent=11 // pred_fallthru
          _
        // Predicated region
        $region17: #{tpu_custom_call.1} parent=11 // pred_check
          %p203 = pneg %p117
        $region18: #{tpu_custom_call.1} parent=11 // pred_check_branch
          %205 = sbr.rel (%p203) target = $region20
        $region19: #{tpu_custom_call.1} parent=11 // pred_region
          %s207 = ssub.s32 4096, 4096
          %208 = vsyncadd [#allocation7], %s207
          %s209 = sshll.u32 [#allocation8], 4
          %s210 = int_to_ptr.vmem [resolvable:$true] %s209
          %215 = dma.hbm_to_vmem [thread:$0]  %s3, 4096, %s210, [#allocation7], 128, 128, 8
        $region20: #{tpu_custom_call.1} parent=11 // pred_fallthru
          _
        // Predicated region
        $region21: #{tpu_custom_call.1} parent=11 // pred_check
          %p216 = pneg %p138
        $region22: #{tpu_custom_call.1} parent=11 // pred_check_branch
          %218 = sbr.rel (%p216) target = $region24
        $region23: #{tpu_custom_call.1} parent=11 // pred_region
          _
        $region24: #{tpu_custom_call.1} parent=11 // pred_fallthru
          _
        // Predicated region
        $region25: #{tpu_custom_call.1} parent=11 // pred_check
          %p219 = pneg %p159
        $region26: #{tpu_custom_call.1} parent=11 // pred_check_branch
          %221 = sbr.rel (%p219) target = $region28
        $region27: #{tpu_custom_call.1} parent=11 // pred_region
          %s223 = ssub.s32 2048, 2048
          %224 = vsyncadd [#allocation10], %s223
          %s225 = sshll.u32 [#allocation9], 4
          %s226 = int_to_ptr.vmem [resolvable:$true] %s225
          %231 = dma.hbm_to_vmem [thread:$0]  %s5, 2048, %s226, [#allocation10], 128, 128, 8
        $region28: #{tpu_custom_call.1} parent=11 // pred_fallthru
          _
      $region12: #{tpu_custom_call.1} parent=5 // pred_fallthru
        _
      %p232 = scmp.lt.s32.totalorder %s23, 2
      // Predicated region
      $region29: #{tpu_custom_call.1} parent=5 // pred_check
        %p233 = pneg %p232
      $region30: #{tpu_custom_call.1} parent=5 // pred_check_branch
        %235 = sbr.rel (%p233) target = $region32
      $region31: #{tpu_custom_call.1} parent=5 // pred_region
        // Predicated region
        $region33: #{tpu_custom_call.1} parent=31 // pred_check
          %p236 = pneg %p64
        $region34: #{tpu_custom_call.1} parent=31 // pred_check_branch
          %238 = sbr.rel (%p236) target = $region36
        $region35: #{tpu_custom_call.1} parent=31 // pred_region
          %s239 = sand.u32 %s54, 1
          %s240 = scalar_lea.sflag [#allocation4], %s239
          %s241 = sand.u32 %s54, 1
          %s242 = smul.addr %s241, 32
          %s243 = scalar_lea.vmem [#allocation3], %s242
          %s245 = ssub.s32 512, 512
          %246 = vsyncadd %s240, %s245
          %s247 = smul.addr %s23, 4
          %s248 = smul.addr %s247, 128
          %s249 = scalar_lea.hbm %s1, %s248
          %s250 = sshll.u32 %s243, 4
          %s251 = int_to_ptr.vmem [resolvable:$true] %s250
          %256 = dma.hbm_to_vmem [thread:$0]  %s249, 512, %s251, %s240, 256, 256, 16
        $region36: #{tpu_custom_call.1} parent=31 // pred_fallthru
          _
        // Predicated region
        $region37: #{tpu_custom_call.1} parent=31 // pred_check
          %p257 = pneg %p90
        $region38: #{tpu_custom_call.1} parent=31 // pred_check_branch
          %259 = sbr.rel (%p257) target = $region40
        $region39: #{tpu_custom_call.1} parent=31 // pred_region
          %s260 = sand.u32 %s23, 1
          %s261 = scalar_lea.sflag [#allocation7], %s260
          %s262 = sand.u32 %s80, 1
          %s263 = smul.addr %s262, 16
          %s264 = scalar_lea.vmem [#allocation6], %s263
          %s266 = ssub.s32 256, 256
          %267 = vsyncadd %s261, %s266
          %s268 = smul.addr %s23, 2
          %s269 = smul.addr %s268, 128
          %s270 = scalar_lea.hbm %s2, %s269
          %s271 = sshll.u32 %s264, 4
          %s272 = int_to_ptr.vmem [resolvable:$true] %s271
          %277 = dma.hbm_to_vmem [thread:$0]  %s270, 256, %s272, %s261, 128, 128, 8
        $region40: #{tpu_custom_call.1} parent=31 // pred_fallthru
          _
      $region32: #{tpu_custom_call.1} parent=5 // pred_fallthru
        _
      %p278 = scmp.le.s32.totalorder 1, %s23
      %p279 = scmp.lt.s32.totalorder %s23, 3
      %p280 = pnand %p278, %p279
      %p281 = pneg %p280
      // Predicated region
      $region41: #{tpu_custom_call.1} parent=5 // pred_check
        _
      $region42: #{tpu_custom_call.1} parent=5 // pred_check_branch
        %283 = sbr.rel (%p280) target = $region44
      $region43: #{tpu_custom_call.1} parent=5 // pred_region
        %s284 = ssub.s32 %s23, 1
        %s285 = sand.u32 %s57, 1
        %s286 = scalar_lea.sflag [#allocation4], %s285
        %s287 = sand.u32 %s57, 1
        %s288 = smul.addr %s287, 32
        %s289 = scalar_lea.vmem [#allocation3], %s288
        // Predicated region
        $region45: #{tpu_custom_call.1} parent=43 // pred_check
          %p290 = pneg %p70
        $region46: #{tpu_custom_call.1} parent=43 // pred_check_branch
          %292 = sbr.rel (%p290) target = $region48
        $region47: #{tpu_custom_call.1} parent=43 // pred_region
          %293 = dma.done %s286, 512
        $region48: #{tpu_custom_call.1} parent=43 // pred_fallthru
          _
        %s294 = sand.u32 %s28, 1
        %s295 = scalar_lea.sflag [#allocation7], %s294
        %s296 = sand.u32 %s83, 1
        %s297 = smul.addr %s296, 16
        %s298 = scalar_lea.vmem [#allocation6], %s297
        // Predicated region
        $region49: #{tpu_custom_call.1} parent=43 // pred_check
          %p299 = pneg %p96
        $region50: #{tpu_custom_call.1} parent=43 // pred_check_branch
          %301 = sbr.rel (%p299) target = $region52
        $region51: #{tpu_custom_call.1} parent=43 // pred_region
          %302 = dma.done %s295, 256
        $region52: #{tpu_custom_call.1} parent=43 // pred_fallthru
          _
        // Predicated region
        $region53: #{tpu_custom_call.1} parent=43 // pred_check
          %p303 = pneg %p117
        $region54: #{tpu_custom_call.1} parent=43 // pred_check_branch
          %305 = sbr.rel (%p303) target = $region56
        $region55: #{tpu_custom_call.1} parent=43 // pred_region
          %306 = dma.done [#allocation7], 4096
        $region56: #{tpu_custom_call.1} parent=43 // pred_fallthru
          _
        // Predicated region
        $region57: #{tpu_custom_call.1} parent=43 // pred_check
          %p307 = pneg %p159
        $region58: #{tpu_custom_call.1} parent=43 // pred_check_branch
          %309 = sbr.rel (%p307) target = $region60
        $region59: #{tpu_custom_call.1} parent=43 // pred_region
          %310 = dma.done [#allocation10], 2048
        $region60: #{tpu_custom_call.1} parent=43 // pred_fallthru
          _
        %p311 = pneg %p44
        %p312 = pneg %p41
        %s313 = sand.u32 %s57, 1
        %s314 = scalar_lea.sflag [#allocation4], %s313
        %s315 = sand.u32 %s57, 1
        %s316 = smul.addr %s315, 32
        %s317 = scalar_lea.vmem [#allocation3], %s316
        %p318 = pneg %p70
        %p319 = pneg %p67
        %s320 = sand.u32 %s28, 1
        %s321 = scalar_lea.sflag [#allocation7], %s320
        %s322 = sand.u32 %s83, 1
        %s323 = smul.addr %s322, 16
        %s324 = scalar_lea.vmem [#allocation6], %s323
        %p325 = pneg %p96
        %p326 = pneg %p93
        %p327 = pneg %p117
        %p328 = pneg %p114
        %p329 = pneg %p138
        %p330 = pneg %p135
        %p331 = pneg %p159
        %p332 = pneg %p156
        %p333 = pneg %p185
        %p334 = pneg %p182
        %s335 = sand.u32 %s172, 1
        %s336 = scalar_lea.sflag [#allocation5], %s335
        %s337 = sand.u32 %s172, 1
        %s338 = smul.addr %s337, 16
        %s339 = scalar_lea.vmem [#allocation11], %s338
        %v340 = vld [vmem:[%s289] sm:$0xff]
        %v341 = vld [vmem:[%s289 + $0x8] sm:$0xff]
        %v342 = vld [vmem:[%s289 + $0x10] sm:$0xff]
        %v343 = vld [vmem:[%s289 + $0x18] sm:$0xff]
        %v344 = vld [vmem:[#allocation8] sm:$0xff]
        %v345 = vld [vmem:[#allocation8 + $0x8] sm:$0xff]
        %v346 = vld [vmem:[#allocation8 + $0x10] sm:$0xff]
        %v347 = vld [vmem:[#allocation8 + $0x18] sm:$0xff]
        %v348 = vld [vmem:[#allocation8 + $0x20] sm:$0xff]
        %v349 = vld [vmem:[#allocation8 + $0x28] sm:$0xff]
        %v350 = vld [vmem:[#allocation8 + $0x30] sm:$0xff]
        %v351 = vld [vmem:[#allocation8 + $0x38] sm:$0xff]
        %v352 = vld [vmem:[#allocation8 + $0x40] sm:$0xff]
        %v353 = vld [vmem:[#allocation8 + $0x48] sm:$0xff]
        %v354 = vld [vmem:[#allocation8 + $0x50] sm:$0xff]
        %v355 = vld [vmem:[#allocation8 + $0x58] sm:$0xff]
        %v356 = vld [vmem:[#allocation8 + $0x60] sm:$0xff]
        %v357 = vld [vmem:[#allocation8 + $0x68] sm:$0xff]
        %v358 = vld [vmem:[#allocation8 + $0x70] sm:$0xff]
        %v359 = vld [vmem:[#allocation8 + $0x78] sm:$0xff]
        %v360 = vld [vmem:[#allocation8 + $0x80] sm:$0xff]
        %v361 = vld [vmem:[#allocation8 + $0x88] sm:$0xff]
        %v362 = vld [vmem:[#allocation8 + $0x90] sm:$0xff]
        %v363 = vld [vmem:[#allocation8 + $0x98] sm:$0xff]
        %v364 = vld [vmem:[#allocation8 + $0xa0] sm:$0xff]
        %v365 = vld [vmem:[#allocation8 + $0xa8] sm:$0xff]
        %v366 = vld [vmem:[#allocation8 + $0xb0] sm:$0xff]
        %v367 = vld [vmem:[#allocation8 + $0xb8] sm:$0xff]
        %v368 = vld [vmem:[#allocation8 + $0xc0] sm:$0xff]
        %v369 = vld [vmem:[#allocation8 + $0xc8] sm:$0xff]
        %v370 = vld [vmem:[#allocation8 + $0xd0] sm:$0xff]
        %v371 = vld [vmem:[#allocation8 + $0xd8] sm:$0xff]
        %v372 = vld [vmem:[#allocation8 + $0xe0] sm:$0xff]
        %v373 = vld [vmem:[#allocation8 + $0xe8] sm:$0xff]
        %v374 = vld [vmem:[#allocation8 + $0xf0] sm:$0xff]
        %v375 = vld [vmem:[#allocation8 + $0xf8] sm:$0xff]
        %376 = vmatprep.subr.mxu0 0.0
        %377 = vmatpush1.msra.mxu0 %v344
        %378 = vmatprep.subr.mxu0 0.0
        %379 = vmatpush1.msra.mxu0 %v345
        %380 = vmatprep.subr.mxu0 0.0
        %381 = vmatpush1.msra.mxu0 %v346
        %382 = vmatprep.subr.mxu0 0.0
        %383 = vmatpush1.msra.mxu0 %v347
        %384 = vmatprep.subr.mxu0 0.0
        %385 = vmatpush1.msra.mxu0 %v348
        %386 = vmatprep.subr.mxu0 0.0
        %387 = vmatpush1.msra.mxu0 %v349
        %388 = vmatprep.subr.mxu0 0.0
        %389 = vmatpush1.msra.mxu0 %v350
        %390 = vmatprep.subr.mxu0 0.0
        %391 = vmatpush1.msra.mxu0 %v351
        %392 = vmatprep.subr.mxu0 0.0
        %393 = vmatpush1.msra.mxu0 %v352
        %394 = vmatprep.subr.mxu0 0.0
        %395 = vmatpush1.msra.mxu0 %v353
        %396 = vmatprep.subr.mxu0 0.0
        %397 = vmatpush1.msra.mxu0 %v354
        %398 = vmatprep.subr.mxu0 0.0
        %399 = vmatpush1.msra.mxu0 %v355
        %400 = vmatprep.subr.mxu0 0.0
        %401 = vmatpush1.msra.mxu0 %v356
        %402 = vmatprep.subr.mxu0 0.0
        %403 = vmatpush1.msra.mxu0 %v357
        %404 = vmatprep.subr.mxu0 0.0
        %405 = vmatpush1.msra.mxu0 %v358
        %406 = vmatprep.subr.mxu0 0.0
        %407 = vmatpush1.msra.mxu0 %v359
        %408 = vmatprep.subr.mxu0 0.0
        %409 = vmatpush1.msra.mxu0 %v360
        %410 = vmatprep.subr.mxu0 0.0
        %411 = vmatpush1.msra.mxu0 %v361
        %412 = vmatprep.subr.mxu0 0.0
        %413 = vmatpush1.msra.mxu0 %v362
        %414 = vmatprep.subr.mxu0 0.0
        %415 = vmatpush1.msra.mxu0 %v363
        %416 = vmatprep.subr.mxu0 0.0
        %417 = vmatpush1.msra.mxu0 %v364
        %418 = vmatprep.subr.mxu0 0.0
        %419 = vmatpush1.msra.mxu0 %v365
        %420 = vmatprep.subr.mxu0 0.0
        %421 = vmatpush1.msra.mxu0 %v366
        %422 = vmatprep.subr.mxu0 0.0
        %423 = vmatpush1.msra.mxu0 %v367
        %424 = vmatprep.subr.mxu0 0.0
        %425 = vmatpush1.msra.mxu0 %v368
        %426 = vmatprep.subr.mxu0 0.0
        %427 = vmatpush1.msra.mxu0 %v369
        %428 = vmatprep.subr.mxu0 0.0
        %429 = vmatpush1.msra.mxu0 %v370
        %430 = vmatprep.subr.mxu0 0.0
        %431 = vmatpush1.msra.mxu0 %v371
        %432 = vmatprep.subr.mxu0 0.0
        %433 = vmatpush1.msra.mxu0 %v372
        %434 = vmatprep.subr.mxu0 0.0
        %435 = vmatpush1.msra.mxu0 %v373
        %436 = vmatprep.subr.mxu0 0.0
        %437 = vmatpush1.msra.mxu0 %v374
        %438 = vmatprep.subr.mxu0 0.0
        %439 = vmatpush1.msra.mxu0 %v375
        %440 = vmatprep.mubr.f32.mxu0 %v341
        %441 = vmatmul.mubr.f32.gmra.mrb[0].mxu0 %v340
        %v442 = vpop.f32.mrb[0].mxu0
        %v443 = vadd.f32 0.0, %v442
        %v444 = vpop.f32.mrb[0].mxu0
        %445 = vmatprep.mubr.f32.mxu0 %v343
        %446 = vmatmul.mubr.f32.gmra.mrb[0].mxu0 %v342
        %v447 = vpop.f32.mrb[0].mxu0
        %v448 = vadd.f32 0.0, %v447
        %v449 = vpop.f32.mrb[0].mxu0
        %450 = vdwg.mxu0
        %v451 = vld [vmem:[#allocation9] sm:$0xff]
        %v452 = vld [vmem:[#allocation9 + $0x8] sm:$0xff]
        %v453 = vld [vmem:[#allocation9 + $0x10] sm:$0xff]
        %v454 = vld [vmem:[#allocation9 + $0x18] sm:$0xff]
        %v455 = vld [vmem:[#allocation9 + $0x20] sm:$0xff]
        %v456 = vld [vmem:[#allocation9 + $0x28] sm:$0xff]
        %v457 = vld [vmem:[#allocation9 + $0x30] sm:$0xff]
        %v458 = vld [vmem:[#allocation9 + $0x38] sm:$0xff]
        %v459 = vld [vmem:[#allocation9 + $0x40] sm:$0xff]
        %v460 = vld [vmem:[#allocation9 + $0x48] sm:$0xff]
        %v461 = vld [vmem:[#allocation9 + $0x50] sm:$0xff]
        %v462 = vld [vmem:[#allocation9 + $0x58] sm:$0xff]
        %v463 = vld [vmem:[#allocation9 + $0x60] sm:$0xff]
        %v464 = vld [vmem:[#allocation9 + $0x68] sm:$0xff]
        %v465 = vld [vmem:[#allocation9 + $0x70] sm:$0xff]
        %v466 = vld [vmem:[#allocation9 + $0x78] sm:$0xff]
        %v467 = vmul.f32 %v443, %v451
        %v468 = vmul.f32 %v448, %v452
        %v469 = vmul.f32 %v443, %v453
        %v470 = vmul.f32 %v448, %v454
        %v471 = vmul.f32 %v443, %v455
        %v472 = vmul.f32 %v448, %v456
        %v473 = vmul.f32 %v443, %v457
        %v474 = vmul.f32 %v448, %v458
        %v475 = vmul.f32 %v443, %v459
        %v476 = vmul.f32 %v448, %v460
        %v477 = vmul.f32 %v443, %v461
        %v478 = vmul.f32 %v448, %v462
        %v479 = vmul.f32 %v443, %v463
        %v480 = vmul.f32 %v448, %v464
        %v481 = vmul.f32 %v443, %v465
        %v482 = vmul.f32 %v448, %v466
        %v483 = vld [vmem:[%s298] sm:$0xff]
        %v484 = vld [vmem:[%s298 + $0x8] sm:$0xff]
        %v485 = vld [vmem:[%s4] sm:$0x1]
        %v487 = vlaneseq
        %v488 = vshrl.u32 %v487, 7
        %v489 = vsub.s32 0, %v488
        %v490 = vrot.slane %v485, %v489
        %492 = vmatprep.subr.mxu0 0.0
        %493 = vmatpush1.msra.mxu0 %v467
        %494 = vmatprep.subr.mxu0 0.0
        %495 = vmatpush1.msra.mxu0 %v468
        %496 = vmatprep.subr.mxu0 0.0
        %497 = vmatpush1.msra.mxu0 %v469
        %498 = vmatprep.subr.mxu0 0.0
        %499 = vmatpush1.msra.mxu0 %v470
        %500 = vmatprep.subr.mxu0 0.0
        %501 = vmatpush1.msra.mxu0 %v471
        %502 = vmatprep.subr.mxu0 0.0
        %503 = vmatpush1.msra.mxu0 %v472
        %504 = vmatprep.subr.mxu0 0.0
        %505 = vmatpush1.msra.mxu0 %v473
        %506 = vmatprep.subr.mxu0 0.0
        %507 = vmatpush1.msra.mxu0 %v474
        %508 = vmatprep.subr.mxu0 0.0
        %509 = vmatpush1.msra.mxu0 %v475
        %510 = vmatprep.subr.mxu0 0.0
        %511 = vmatpush1.msra.mxu0 %v476
        %512 = vmatprep.subr.mxu0 0.0
        %513 = vmatpush1.msra.mxu0 %v477
        %514 = vmatprep.subr.mxu0 0.0
        %515 = vmatpush1.msra.mxu0 %v478
        %516 = vmatprep.subr.mxu0 0.0
        %517 = vmatpush1.msra.mxu0 %v479
        %518 = vmatprep.subr.mxu0 0.0
        %519 = vmatpush1.msra.mxu0 %v480
        %520 = vmatprep.subr.mxu0 0.0
        %521 = vmatpush1.msra.mxu0 %v481
        %522 = vmatprep.subr.mxu0 0.0
        %523 = vmatpush1.msra.mxu0 %v482
        %524 = vmatprep.subr.mxu0 0.0
        %525 = vmatpush1.msra.mxu0 0.0
        %526 = vmatprep.subr.mxu0 0.0
        %527 = vmatpush1.msra.mxu0 0.0
        %528 = vmatprep.subr.mxu0 0.0
        %529 = vmatpush1.msra.mxu0 0.0
        %530 = vmatprep.subr.mxu0 0.0
        %531 = vmatpush1.msra.mxu0 0.0
        %532 = vmatprep.subr.mxu0 0.0
        %533 = vmatpush1.msra.mxu0 0.0
        %534 = vmatprep.subr.mxu0 0.0
        %535 = vmatpush1.msra.mxu0 0.0
        %536 = vmatprep.subr.mxu0 0.0
        %537 = vmatpush1.msra.mxu0 0.0
        %538 = vmatprep.subr.mxu0 0.0
        %539 = vmatpush1.msra.mxu0 0.0
        %540 = vmatprep.subr.mxu0 0.0
        %541 = vmatpush1.msra.mxu0 0.0
        %542 = vmatprep.subr.mxu0 0.0
        %543 = vmatpush1.msra.mxu0 0.0
        %544 = vmatprep.subr.mxu0 0.0
        %545 = vmatpush1.msra.mxu0 0.0
        %546 = vmatprep.subr.mxu0 0.0
        %547 = vmatpush1.msra.mxu0 0.0
        %548 = vmatprep.subr.mxu0 0.0
        %549 = vmatpush1.msra.mxu0 0.0
        %550 = vmatprep.subr.mxu0 0.0
        %551 = vmatpush1.msra.mxu0 0.0
        %552 = vmatprep.subr.mxu0 0.0
        %553 = vmatpush1.msra.mxu0 0.0
        %554 = vmatprep.subr.mxu0 0.0
        %555 = vmatpush1.msra.mxu0 0.0
        %556 = vmatprep.mubr.f32.mxu0 0.0
        %557 = vmatmul.mubr.f32.gmra.mrb[0].mxu0 %v483
        %v558 = vpop.f32.mrb[0].mxu0
        %v559 = vadd.f32 %v490, %v558
        %v560 = vpop.f32.mrb[0].mxu0
        %561 = vmatprep.mubr.f32.mxu0 0.0
        %562 = vmatmul.mubr.f32.gmra.mrb[0].mxu0 %v484
        %v563 = vpop.f32.mrb[0].mxu0
        %v564 = vadd.f32 %v490, %v563
        %v565 = vpop.f32.mrb[0].mxu0
        %566 = vdwg.mxu0
        %s567 = sld [smem:[#allocation2]]
        %vm568 = vcmp.gt.f32.partialorder %v559, 0.0
        %vm569 = vcmp.gt.f32.partialorder %v564, 0.0
        %v570 = vstv %s567
        %v571 = vmul.f32 %v570, %v559
        %v572 = vmul.f32 %v570, %v564
        %v573 = vsel %vm568, %v559, %v571
        %v574 = vsel %vm569, %v564, %v572
        %575 = vst [vmem:[%s339] sm:$0xff] %v573
        %576 = vst [vmem:[%s339 + $0x8] sm:$0xff] %v574
        %s577 = sand.u32 %s172, 1
        %s578 = scalar_lea.sflag [#allocation5], %s577
        %s579 = sand.u32 %s172, 1
        %s580 = smul.addr %s579, 16
        %s581 = scalar_lea.vmem [#allocation11], %s580
        // Predicated region
        $region61: #{tpu_custom_call.1} parent=43 // pred_check
          %p582 = pneg %p182
        $region62: #{tpu_custom_call.1} parent=43 // pred_check_branch
          %584 = sbr.rel (%p582) target = $region64
        $region63: #{tpu_custom_call.1} parent=43 // pred_region
          %s586 = ssub.s32 256, 256
          %587 = vsyncadd %s578, %s586
          %s588 = smul.addr %s28, 2
          %s589 = smul.addr %s588, 128
          %s590 = scalar_lea.hbm %s6, %s589
          %s591 = sshll.u32 %s581, 4
          %s592 = int_to_ptr.vmem [resolvable:$true] %s591
          %597 = dma.vmem_to_hbm [thread:$0]  %s592, 256, %s590, %s578, 128, 128, 8
        $region64: #{tpu_custom_call.1} parent=43 // pred_fallthru
          _
      $region44: #{tpu_custom_call.1} parent=5 // pred_fallthru
        _
      %p598 = scmp.le.s32.totalorder 2, %s23
      // Predicated region
      $region65: #{tpu_custom_call.1} parent=5 // pred_check
        %p599 = pneg %p598
      $region66: #{tpu_custom_call.1} parent=5 // pred_check_branch
        %601 = sbr.rel (%p599) target = $region68
      $region67: #{tpu_custom_call.1} parent=5 // pred_region
        %s602 = ssub.s32 %s23, 2
        // Predicated region
        $region69: #{tpu_custom_call.1} parent=67 // pred_check
          %p603 = pneg %p188
        $region70: #{tpu_custom_call.1} parent=67 // pred_check_branch
          %605 = sbr.rel (%p603) target = $region72
        $region71: #{tpu_custom_call.1} parent=67 // pred_region
          %s606 = sand.u32 %s173, 1
          %s607 = scalar_lea.sflag [#allocation5], %s606
          %s608 = sand.u32 %s173, 1
          %s609 = smul.addr %s608, 16
          %s610 = scalar_lea.vmem [#allocation11], %s609
          %611 = dma.done %s607, 256
        $region72: #{tpu_custom_call.1} parent=67 // pred_fallthru
          _
      $region68: #{tpu_custom_call.1} parent=5 // pred_fallthru
        _
    $region6: #{tpu_custom_call.1} parent=1 // loop_footer
      %s27 = sadd.s32 1, %s23
    $region7: #{tpu_custom_call.1} parent=1 // loop_footer_branch
      %22 = sbr.rel target = $region3
    $region8: #{tpu_custom_call.1} parent=1 // loop_exit
      _
    %612 = vsyncpa [#allocation4], 1
    %s613 = scalar_lea.sflag [#allocation4], 1
    %614 = vsyncpa %s613, 1
    %615 = vsyncpa [#allocation7], 1
    %s616 = scalar_lea.sflag [#allocation7], 1
    %617 = vsyncpa %s616, 1
    %618 = vsyncpa [#allocation10], 1
    %619 = vsyncpa [#allocation5], 1
    %s620 = scalar_lea.sflag [#allocation5], 1
    %621 = vsyncpa %s620, 1

</llo_original>
